<compile_context>
chip_gen: v6e
topology: v6e:2x2x1
jax: 0.10.0
libtpu: 0.0.40
codegen_flags: <defaults>
</compile_context>

<pallas_src>
import functools

import jax
import jax.numpy as jnp
from jax.experimental import pallas as pl
from jax.experimental.pallas import tpu as pltpu


# --------------------------------------------------------------------------
# Fused kernel: max-pool over HW -> channel conv (band matmul) -> sigmoid
#               -> out = x * gate, all on one resident (C, HW) slab.
# --------------------------------------------------------------------------
def _eca_fused_kernel(band_ref, x_ref, o_ref):
    # band_ref: (C, C) f32  zero-padded Conv1d(1,1,k) as a band matrix (resident)
    # x_ref:    (C, HW)     full per-batch slab (channels on sublanes, HW on lanes)
    # o_ref:    (C, HW)
    pooled = jnp.max(x_ref[...], axis=-1, keepdims=True).astype(jnp.float32)  # (C, 1)
    y = jnp.dot(band_ref[...], pooled, preferred_element_type=jnp.float32)    # (C, 1)
    gate = jax.nn.sigmoid(y).astype(o_ref.dtype)                              # (C, 1)
    o_ref[...] = (x_ref[...] * gate).astype(o_ref.dtype)


# --------------------------------------------------------------------------
# Fallback pass 1: running max over HW tiles (tail tile masked to -inf).
# --------------------------------------------------------------------------
def _eca_pool_kernel(x_ref, p_ref, *, hw):
    # x_ref: (C, THW) tile; p_ref: (C, 1) f32 resident accumulator across t.
    t = pl.program_id(1)
    thw = x_ref.shape[-1]
    col = t * thw + jax.lax.broadcasted_iota(jnp.int32, x_ref.shape, 1)
    xv = x_ref[...]
    xv = jnp.where(col < hw, xv, jnp.asarray(-jnp.inf, dtype=xv.dtype))
    tile_max = jnp.max(xv, axis=-1, keepdims=True).astype(jnp.float32)

    @pl.when(t == 0)
    def _():
        p_ref[...] = tile_max

    @pl.when(t != 0)
    def _():
        p_ref[...] = jnp.maximum(p_ref[...], tile_max)


# --------------------------------------------------------------------------
# Fallback pass 2: out = x * gate  (pure streaming multiply, native dtype).
# --------------------------------------------------------------------------
def _eca_apply_kernel(g_ref, x_ref, o_ref):
    # g_ref: (C, 1) f32 gate; x_ref / o_ref: (C, THW)
    o_ref[...] = (x_ref[...] * g_ref[...].astype(x_ref.dtype)).astype(o_ref.dtype)


# --------------------------------------------------------------------------
# Wrapper helpers (plain JAX, all tiny).
# --------------------------------------------------------------------------
def _band_matrix(w, c, k_size, pad):
    """(C, C) f32 matrix M with M[out, src] = w[src - out + pad] inside the band."""
    i_out = jnp.arange(c, dtype=jnp.int32)[:, None]
    i_src = jnp.arange(c, dtype=jnp.int32)[None, :]
    d = i_src - i_out + pad
    m = jnp.zeros((c, c), jnp.float32)
    for j in range(k_size):
        m = m + jnp.where(d == j, w[j], 0.0)
    return m


def _gate_from_pooled(pooled, w, k_size, pad):
    """pooled: (B, C) f32 -> sigmoid(zero-padded Conv1d over channels), (B, C) f32."""
    c = pooled.shape[-1]
    padded = jnp.pad(pooled, ((0, 0), (pad, pad)))
    y = sum(w[j] * padded[:, j:j + c] for j in range(k_size))
    return jax.nn.sigmoid(y)


def _pick_hw_tile(hw, c, itemsize, target_bytes):
    """Lane-dense (multiple-of-128) HW tile, ~target_bytes per (C, THW) buffer."""
    hw_pad = pl.cdiv(hw, 128) * 128
    lanes = (target_bytes // max(1, c * itemsize)) // 128 * 128
    return int(max(128, min(lanes, hw_pad)))


def _vmem_budgets():
    """Per-generation VMEM budgets (v7x has only 64 MiB physical VMEM)."""
    try:
        cap = int(pltpu.get_tpu_info().vmem_capacity_bytes)
    except Exception:
        cap = 64 << 20  # conservative: assume the smallest (v7x-like) VMEM
    if cap >= (128 << 20):   # v5e / v6e: 128 MiB physical
        return dict(fused_budget=56 << 20, fused_limit=64 << 20,
                    tile_target=4 << 20, two_pass_limit=32 << 20)
    # v7x-safe defaults
    return dict(fused_budget=40 << 20, fused_limit=48 << 20,
                tile_target=2 << 20, two_pass_limit=32 << 20)


# --------------------------------------------------------------------------
# Public wrapper (accepts / returns NCHW like PyTorch).
# --------------------------------------------------------------------------
def eca_forward(x_nchw, conv_w, k_size=3, *, force_two_pass=False, hw_tile=None):
    """ECA forward. x_nchw: (B, C, H, W); conv_w: (1, 1, k_size) (PyTorch layout)."""
    B, C, H, W = x_nchw.shape
    HW = H * W
    pad = (k_size - 1) // 2
    itemsize = jnp.dtype(x_nchw.dtype).itemsize

    x = x_nchw.reshape(B, C, HW)                 # free reshape, native layout
    w = conv_w.reshape(-1).astype(jnp.float32)   # (k,)

    budgets = _vmem_budgets()
    slab_bytes = C * HW * itemsize
    band_bytes = C * C * 4
    # Live pipeline footprint for the fused path: 2x input slab + 2x output
    # slab (default double buffering) + 2x band matrix + margin.
    fused_ok = (4 * slab_bytes + 2 * band_bytes + (2 << 20)) <= budgets["fused_budget"]

    if fused_ok and not force_two_pass:
        # ---- single fused pass: read x once, write out once (2x HBM traffic) ----
        band = _band_matrix(w, C, k_size, pad)
        out = pl.pallas_call(
            _eca_fused_kernel,
            out_shape=jax.ShapeDtypeStruct((B, C, HW), x.dtype),
            grid=(B,),
            in_specs=[
                pl.BlockSpec((C, C), lambda b: (0, 0)),            # band (resident)
                pl.BlockSpec((None, C, HW), lambda b: (b, 0, 0)),  # x slab
            ],
            out_specs=pl.BlockSpec((None, C, HW), lambda b: (b, 0, 0)),
            compiler_params=pltpu.CompilerParams(
                dimension_semantics=("parallel",),      # megacore shards over batch
                vmem_limit_bytes=budgets["fused_limit"]),
            cost_estimate=pl.CostEstimate(
                flops=int(B * (2 * C * HW + 2 * C * C)),
                transcendentals=int(B * C),
                bytes_accessed=int(2 * B * C * HW * itemsize + band_bytes)),
        )(band, x)
        return out.reshape(B, C, H, W)

    # ---- fallback: two lane-dense streaming passes (cdiv tiling, masked tail) ----
    thw = int(hw_tile) if hw_tile is not None else _pick_hw_tile(
        HW, C, itemsize, budgets["tile_target"])
    n_t = pl.cdiv(HW, thw)

    pooled = pl.pallas_call(
        functools.partial(_eca_pool_kernel, hw=HW),
        out_shape=jax.ShapeDtypeStruct((B, C, 1), jnp.float32),
        grid=(B, n_t),
        in_specs=[pl.BlockSpec((None, C, thw), lambda b, t: (b, 0, t))],
        out_specs=pl.BlockSpec((None, C, 1), lambda b, t: (b, 0, 0)),
        compiler_params=pltpu.CompilerParams(
            dimension_semantics=("parallel", "arbitrary"),
            vmem_limit_bytes=budgets["two_pass_limit"]),
        cost_estimate=pl.CostEstimate(
            flops=int(B * C * HW), transcendentals=0,
            bytes_accessed=int(B * C * HW * itemsize + B * C * 4)),
    )(x)

    # Channel conv + sigmoid on the tiny (B, C) pooled vector in plain JAX —
    # keeps both streaming kernels pure-bandwidth; extra traffic is ~B*C*4 B.
    gate = _gate_from_pooled(pooled[..., 0], w, k_size, pad)[..., None]  # (B, C, 1)

    out = pl.pallas_call(
        _eca_apply_kernel,
        out_shape=jax.ShapeDtypeStruct((B, C, HW), x.dtype),
        grid=(B, n_t),
        in_specs=[
            pl.BlockSpec((None, C, 1), lambda b, t: (b, 0, 0)),    # gate
            pl.BlockSpec((None, C, thw), lambda b, t: (b, 0, t)),  # x tile
        ],
        out_specs=pl.BlockSpec((None, C, thw), lambda b, t: (b, 0, t)),
        compiler_params=pltpu.CompilerParams(
            dimension_semantics=("parallel", "parallel"),
            vmem_limit_bytes=budgets["two_pass_limit"]),
        # TODO(synk): input_output_aliases={1: 0} (donate x into out) helps only
        # when the caller can actually donate x; left off because callers here
        # reuse x afterwards (XLA would insert a defeating copy).
        cost_estimate=pl.CostEstimate(
            flops=int(B * C * HW), transcendentals=0,
            bytes_accessed=int(2 * B * C * HW * itemsize + B * C * 4)),
    )(gate, x)

    return out.reshape(B, C, H, W)


# --------------------------------------------------------------------------
# Pure-JAX reference of the PyTorch forward (for correctness check).
# --------------------------------------------------------------------------
def eca_reference(x, conv_w, k_size=3):
    B, C, H, W = x.shape
    pad = (k_size - 1) // 2
    w = conv_w.reshape(-1)
    pooled = jnp.max(x, axis=(2, 3))                          # (B, C)  max pool
    pooled_pad = jnp.pad(pooled, ((0, 0), (pad, pad)))        # zero pad like Conv1d
    y = sum(w[j] * pooled_pad[:, j:j + C] for j in range(k_size))
    s = jax.nn.sigmoid(y)
    return x * s[:, :, None, None]


if __name__ == "__main__":
    key = jax.random.PRNGKey(0)
    kx, kw, kx2 = jax.random.split(key, 3)

    k_size = 3
    # Deterministic Conv1d(1, 1, 3, bias=False) weight init (kaiming-uniform-like bound)
    bound = 1.0 / (1 * k_size) ** 0.5
    conv_w = jax.random.uniform(kw, (1, 1, k_size), minval=-bound, maxval=bound,
                                dtype=jnp.float32)

    # --- fused single-pass path -------------------------------------------
    B, C, H, W = 2, 4, 16, 16
    x = jax.random.normal(kx, (B, C, H, W), dtype=jnp.float32)
    out = jax.block_until_ready(eca_forward(x, conv_w, k_size=k_size))
    ref = eca_reference(x, conv_w, k_size=k_size)
    assert out.shape == x.shape and out.dtype == x.dtype
    assert jnp.allclose(out, ref, atol=1e-5, rtol=1e-5), float(
        jnp.max(jnp.abs(out - ref)))

    # --- fallback 2-pass path (cdiv tiling + masked tail tile) --------------
    B2, C2, H2, W2 = 2, 4, 13, 13           # HW = 169: exercises the -inf tail mask
    x2 = jax.random.normal(kx2, (B2, C2, H2, W2), dtype=jnp.float32)
    out2 = jax.block_until_ready(
        eca_forward(x2, conv_w, k_size=k_size, force_two_pass=True, hw_tile=128))
    ref2 = eca_reference(x2, conv_w, k_size=k_size)
    assert out2.shape == x2.shape and out2.dtype == x2.dtype
    assert jnp.allclose(out2, ref2, atol=1e-5, rtol=1e-5), float(
        jnp.max(jnp.abs(out2 - ref2)))

    print("KERNEL_OK")
</pallas_src>

<mosaic_0001>
module attributes {stable_mosaic.version = 11 : i64} {
  func.func @_eca_fused_kernel(%arg0: i32, %arg1: memref<4x4xf32, #tpu.memory_space<vmem>>, %arg2: memref<1x4x256xf32, #tpu.memory_space<vmem>>, %arg3: memref<1x4x256xf32, #tpu.memory_space<vmem>>) attributes {dimension_semantics = [#tpu.dimension_semantics<parallel>], iteration_bounds = array<i64: 2>, scalar_prefetch = 0 : i64, scratch_operands = 0 : i64, tpu.core_type = #tpu.core_type<tc>, window_params = [{pipeline_mode = #tpu.pipeline_mode<synchronous>, transform_indices = @transform_0, window_bounds = array<i64: 4, 4>}, {transform_indices = @transform_1, window_bounds = array<i64: 1, 4, 256>}, {transform_indices = @transform_2, window_bounds = array<i64: 1, 4, 256>}]} {
    %c0 = arith.constant 0 : index
    %c0_0 = arith.constant 0 : index
    %c0_1 = arith.constant 0 : index
    %0 = vector.load %arg2[%c0, %c0_0, %c0_1] : memref<1x4x256xf32, #tpu.memory_space<vmem>>, vector<1x4x256xf32>
    %1 = vector.shape_cast %0 : vector<1x4x256xf32> to vector<4x256xf32>
    %cst = arith.constant dense<0xFF800000> : vector<4xf32>
    %2 = vector.multi_reduction <maximumf>, %1, %cst [1] : vector<4x256xf32> to vector<4xf32>
    %3 = vector.shape_cast %2 : vector<4xf32> to vector<4x1xf32>
    %c0_2 = arith.constant 0 : index
    %c0_3 = arith.constant 0 : index
    %4 = vector.load %arg1[%c0_2, %c0_3] : memref<4x4xf32, #tpu.memory_space<vmem>>, vector<4x4xf32>
    %cst_4 = arith.constant dense<0.000000e+00> : vector<4x1xf32>
    %5 = tpu.matmul %4, %3, %cst_4 {dimension_numbers = #tpu.dot_dimension_numbers<[1], [0], [0], [1], [0, 0, 1, 1], [], []>} : vector<4x4xf32>, vector<4x1xf32>, vector<4x1xf32> -> vector<4x1xf32>
    %6 = arith.negf %5 : vector<4x1xf32>
    %7 = math.exp %6 : vector<4x1xf32>
    %cst_5 = arith.constant 1.000000e+00 : f32
    %8 = vector.broadcast %cst_5 : f32 to vector<4x1xf32>
    %9 = arith.addf %8, %7 : vector<4x1xf32>
    %10 = arith.divf %8, %9 : vector<4x1xf32>
    %c0_6 = arith.constant 0 : index
    %c0_7 = arith.constant 0 : index
    %c0_8 = arith.constant 0 : index
    %11 = vector.load %arg2[%c0_6, %c0_7, %c0_8] : memref<1x4x256xf32, #tpu.memory_space<vmem>>, vector<1x4x256xf32>
    %12 = vector.shape_cast %11 : vector<1x4x256xf32> to vector<4x256xf32>
    %13 = vector.broadcast %10 : vector<4x1xf32> to vector<4x256xf32>
    %14 = arith.mulf %12, %13 : vector<4x256xf32>
    %c0_9 = arith.constant 0 : index
    %c0_10 = arith.constant 0 : index
    %c0_11 = arith.constant 0 : index
    %15 = vector.load %arg3[%c0_9, %c0_10, %c0_11] : memref<1x4x256xf32, #tpu.memory_space<vmem>>, vector<1x4x256xf32>
    %16 = vector.shape_cast %15 : vector<1x4x256xf32> to vector<4x256xf32>
    %17 = vector.shape_cast %14 : vector<4x256xf32> to vector<1x4x256xf32>
    tpu.vector_store %arg3[%c0_9, %c0_10, %c0_11], %17 {strides = array<i32>} : memref<1x4x256xf32, #tpu.memory_space<vmem>>, vector<1x4x256xf32>,
    return
  }
  func.func @transform_0(%arg0: i32) -> (i32, i32) {
    %c0_i32 = arith.constant 0 : i32
    %c0_i32_0 = arith.constant 0 : i32
    %c0_i32_1 = arith.constant 0 : i32
    return %c0_i32, %c0_i32_0 : i32, i32
  }
  func.func @transform_1(%arg0: i32) -> (i32, i32, i32) {
    %c0_i32 = arith.constant 0 : i32
    %c0_i32_0 = arith.constant 0 : i32
    %c0_i32_1 = arith.constant 0 : i32
    return %arg0, %c0_i32, %c0_i32_0 : i32, i32, i32
  }
  func.func @transform_2(%arg0: i32) -> (i32, i32, i32) {
    %c0_i32 = arith.constant 0 : i32
    %c0_i32_0 = arith.constant 0 : i32
    %c0_i32_1 = arith.constant 0 : i32
    return %arg0, %c0_i32, %c0_i32_0 : i32, i32, i32
  }
}

</mosaic_0001>

<llo_original>
// kernel: tpu_custom_call.1
$region0: #{tpu_custom_call.1}
  #allocation0 [shape = 'u32[]', space=smem, size = 0x4, offset = 0x4, fixed_abs, tag = 'smem constant byte address 0x4 - core index']
  #allocation1 [shape = 'u32[144,128]{1,0:T(1,128)}', space=vmem, size = 0x12000, scoped, tag = 'internal scratch']
  %s0 = inlined_call_operand.hbm [shape: f32[4,4], index: 0, kind: input, shape index: {}]
  %s1 = inlined_call_operand.hbm [shape: f32[2,4,256], index: 1, kind: input, shape index: {}]
  %s2 = inlined_call_operand.hbm [shape: f32[2,4,256], index: 2, kind: output, shape index: {}]
  %s3 = sld [smem:[#allocation0]]
  $region49: #{tpu_custom_call.1} parent=0
    _
  %s5 = ssub.s32 1, %s3
  %s6 = scalar_select 0, %s5, %s3
  $region1: #{tpu_custom_call.1} parent=0
    #allocation2 [shape = 'u8[2048]{0}', space=vmem, size = 0x800, scoped, tag = 'input window, operand 0, single buffered']
    #allocation3 [shape = 's32[2]{0}', space=sflag, size = 0x8, scoped, tag = 'scoped memory for tpu_custom_call.1']
    #allocation4 [shape = 's32[2]{0}', space=sflag, size = 0x8, scoped, tag = 'scoped memory for tpu_custom_call.1']
    #allocation5 [shape = 'u8[8192]{0}', space=vmem, size = 0x2000, scoped, tag = 'input window, operand 1']
    #allocation6 [shape = 's32[2]{0}', space=sflag, size = 0x8, scoped, tag = 'scoped memory for tpu_custom_call.1']
    #allocation7 [shape = 'u8[8192]{0}', space=vmem, size = 0x2000, scoped, tag = 'output window, operand 0']
    %7 = vsyncpa [#allocation3], 0
    %8 = vsyncpa [#allocation6], 0
    %s9 = scalar_lea.sflag [#allocation6], 1
    %10 = vsyncpa %s9, 0
    %11 = vsyncpa [#allocation4], 0
    %s12 = scalar_lea.sflag [#allocation4], 1
    %13 = vsyncpa %s12, 0
    loop: start=0, step=1, limit=4
    $region2: #{tpu_custom_call.1} parent=1 // loop_pre_header
      _
    $region3: #{tpu_custom_call.1} parent=1 // loop_header
      %s15 = sphi 0, %s19
      %p16 = scmp.ge.s32.totalorder %s15, 4
      %s23 = sphi 0, %s23
      %s25 = sphi 0, %s23
      %s26 = sphi 0, %s25
      %s40 = sphi 0, %s26
      %s46 = sphi 0, %s48
      %s49 = sphi 0, %s46
      %s50 = sphi 0, %s49
      %s66 = sphi 0, %s50
      %s72 = sphi 0, %s74
      %s75 = sphi 0, %s72
      %s76 = sphi 0, %s75
      %s92 = sphi 0, %s76
    $region4: #{tpu_custom_call.1} parent=1 // loop_header_branch
      %18 = sbr.rel (%p16) target = $region8
    $region5: #{tpu_custom_call.1} parent=1 // loop_body
      %s20 = ssub.s32 %s15, 1
      %s21 = ssub.s32 %s15, 2
      %s22 = sadd.s32 %s15, 1
      %s24 = sadd.s32 %s23, 1
      %p27 = scmp.eq.s32.totalorder %s15, 1
      %p28 = scmp.ne.s32.totalorder %s23, %s25
      %p29 = scmp.eq.s32.totalorder %s15, 0
      %p30 = por %p28, %p29
      %p31 = scmp.ne.s32.totalorder %s23, %s25
      %p32 = scmp.eq.s32.totalorder %s20, 1
      %p33 = por %p31, %p32
      %p34 = scmp.ne.s32.totalorder %s25, %s26
      %p35 = scmp.eq.s32.totalorder %s20, 0
      %p36 = por %p34, %p35
      %p37 = scmp.ne.s32.totalorder %s25, %s26
      %p38 = scmp.eq.s32.totalorder %s21, 1
      %p39 = por %p37, %p38
      %p41 = scmp.ne.s32.totalorder %s26, %s40
      %p42 = scmp.eq.s32.totalorder %s21, 0
      %p43 = por %p41, %p42
      %s44 = ssub.s32 %s15, %s22
      %p45 = scmp.eq.s32.totalorder %s44, 0
      %s47 = sadd.s32 %s46, 1
      %s48 = scalar_select %p45, %s46, %s47
      %p51 = pneg %p45
      %p52 = scmp.eq.s32.totalorder %s15, 1
      %p53 = por %p51, %p52
      %p54 = scmp.ne.s32.totalorder %s46, %s49
      %p55 = scmp.eq.s32.totalorder %s15, 0
      %p56 = por %p54, %p55
      %p57 = scmp.ne.s32.totalorder %s46, %s49
      %p58 = scmp.eq.s32.totalorder %s20, 1
      %p59 = por %p57, %p58
      %p60 = scmp.ne.s32.totalorder %s49, %s50
      %p61 = scmp.eq.s32.totalorder %s20, 0
      %p62 = por %p60, %p61
      %p63 = scmp.ne.s32.totalorder %s49, %s50
      %p64 = scmp.eq.s32.totalorder %s21, 1
      %p65 = por %p63, %p64
      %p67 = scmp.ne.s32.totalorder %s50, %s66
      %p68 = scmp.eq.s32.totalorder %s21, 0
      %p69 = por %p67, %p68
      %s70 = ssub.s32 %s15, %s22
      %p71 = scmp.eq.s32.totalorder %s70, 0
      %s73 = sadd.s32 %s72, 1
      %s74 = scalar_select %p71, %s72, %s73
      %p77 = pneg %p71
      %p78 = scmp.eq.s32.totalorder %s15, 1
      %p79 = por %p77, %p78
      %p80 = scmp.ne.s32.totalorder %s72, %s75
      %p81 = scmp.eq.s32.totalorder %s15, 0
      %p82 = por %p80, %p81
      %p83 = scmp.ne.s32.totalorder %s72, %s75
      %p84 = scmp.eq.s32.totalorder %s20, 1
      %p85 = por %p83, %p84
      %p86 = scmp.ne.s32.totalorder %s75, %s76
      %p87 = scmp.eq.s32.totalorder %s20, 0
      %p88 = por %p86, %p87
      %p89 = scmp.ne.s32.totalorder %s75, %s76
      %p90 = scmp.eq.s32.totalorder %s21, 1
      %p91 = por %p89, %p90
      %p93 = scmp.ne.s32.totalorder %s76, %s92
      %p94 = scmp.eq.s32.totalorder %s21, 0
      %p95 = por %p93, %p94
      %p96 = scmp.le.s32.totalorder 1, %s15
      %p97 = scmp.lt.s32.totalorder %s15, 3
      %p98 = pnand %p96, %p97
      %p99 = pneg %p98
      // Predicated region
      $region9: #{tpu_custom_call.1} parent=5 // pred_check
        _
      $region10: #{tpu_custom_call.1} parent=5 // pred_check_branch
        %101 = sbr.rel (%p98) target = $region12
      $region11: #{tpu_custom_call.1} parent=5 // pred_region
        %s102 = ssub.s32 %s15, 1
        // Predicated region
        $region13: #{tpu_custom_call.1} parent=11 // pred_check
          %p103 = pneg %p36
        $region14: #{tpu_custom_call.1} parent=11 // pred_check_branch
          %105 = sbr.rel (%p103) target = $region16
        $region15: #{tpu_custom_call.1} parent=11 // pred_region
          %s107 = ssub.s32 64, 64
          %108 = vsyncadd [#allocation3], %s107
          %s110 = sshll.u32 [#allocation2], 4
          %s111 = int_to_ptr.vmem [resolvable:$true] %s110
          %113 = dma.hbm_to_vmem [thread:$0]  %s0, 64, %s111, [#allocation3]
        $region16: #{tpu_custom_call.1} parent=11 // pred_fallthru
          _
      $region12: #{tpu_custom_call.1} parent=5 // pred_fallthru
        _
      %p114 = scmp.lt.s32.totalorder %s15, 2
      // Predicated region
      $region17: #{tpu_custom_call.1} parent=5 // pred_check
        %p115 = pneg %p114
      $region18: #{tpu_custom_call.1} parent=5 // pred_check_branch
        %117 = sbr.rel (%p115) target = $region20
      $region19: #{tpu_custom_call.1} parent=5 // pred_region
        // Predicated region
        $region21: #{tpu_custom_call.1} parent=19 // pred_check
          %p118 = pneg %p56
        $region22: #{tpu_custom_call.1} parent=19 // pred_check_branch
          %120 = sbr.rel (%p118) target = $region24
        $region23: #{tpu_custom_call.1} parent=19 // pred_region
          %s121 = sand.u32 %s46, 1
          %s122 = scalar_lea.sflag [#allocation6], %s121
          %s123 = sand.u32 %s46, 1
          %s124 = smul.addr %s123, 8
          %s125 = scalar_lea.vmem [#allocation5], %s124
          %s127 = ssub.s32 128, 128
          %128 = vsyncadd %s122, %s127
          %s129 = smul.addr %s15, 2
          %s130 = smul.addr %s129, 64
          %s131 = scalar_lea.hbm %s1, %s130
          %s133 = sshll.u32 %s125, 4
          %s134 = int_to_ptr.vmem [resolvable:$true] %s133
          %136 = dma.hbm_to_vmem [thread:$0]  %s131, 128, %s134, %s122
        $region24: #{tpu_custom_call.1} parent=19 // pred_fallthru
          _
      $region20: #{tpu_custom_call.1} parent=5 // pred_fallthru
        _
      %p137 = scmp.le.s32.totalorder 1, %s15
      %p138 = scmp.lt.s32.totalorder %s15, 3
      %p139 = pnand %p137, %p138
      %p140 = pneg %p139
      // Predicated region
      $region25: #{tpu_custom_call.1} parent=5 // pred_check
        _
      $region26: #{tpu_custom_call.1} parent=5 // pred_check_branch
        %142 = sbr.rel (%p139) target = $region28
      $region27: #{tpu_custom_call.1} parent=5 // pred_region
        %s143 = ssub.s32 %s15, 1
        // Predicated region
        $region29: #{tpu_custom_call.1} parent=27 // pred_check
          %p144 = pneg %p36
        $region30: #{tpu_custom_call.1} parent=27 // pred_check_branch
          %146 = sbr.rel (%p144) target = $region32
        $region31: #{tpu_custom_call.1} parent=27 // pred_region
          %147 = dma.done [#allocation3], 64
        $region32: #{tpu_custom_call.1} parent=27 // pred_fallthru
          _
        %s148 = sand.u32 %s49, 1
        %s149 = scalar_lea.sflag [#allocation6], %s148
        %s150 = sand.u32 %s49, 1
        %s151 = smul.addr %s150, 8
        %s152 = scalar_lea.vmem [#allocation5], %s151
        // Predicated region
        $region33: #{tpu_custom_call.1} parent=27 // pred_check
          %p153 = pneg %p62
        $region34: #{tpu_custom_call.1} parent=27 // pred_check_branch
          %155 = sbr.rel (%p153) target = $region36
        $region35: #{tpu_custom_call.1} parent=27 // pred_region
          %156 = dma.done %s149, 128
        $region36: #{tpu_custom_call.1} parent=27 // pred_fallthru
          _
        %p157 = pneg %p36
        %p158 = pneg %p33
        %s159 = sand.u32 %s49, 1
        %s160 = scalar_lea.sflag [#allocation6], %s159
        %s161 = sand.u32 %s49, 1
        %s162 = smul.addr %s161, 8
        %s163 = scalar_lea.vmem [#allocation5], %s162
        %p164 = pneg %p62
        %p165 = pneg %p59
        %p166 = pneg %p88
        %p167 = pneg %p85
        %s168 = sand.u32 %s75, 1
        %s169 = scalar_lea.sflag [#allocation4], %s168
        %s170 = sand.u32 %s75, 1
        %s171 = smul.addr %s170, 8
        %s172 = scalar_lea.vmem [#allocation7], %s171
        %v173 = vld [vmem:[%s152] sm:$0xff]
        %v175 = vcombine.high %v173, %v173
        %vm177 = vcmask 1043456
        %v178 = vsel %vm177, %v173, -inf
        %v179 = vsel %vm177, %v175, -inf
        %v180 = vmax.f32 %v178, %v179
        %181 = vmax.xlane.f32.xlu0 %v180
        %v182 = vpop.xlane.xlu0 %181
        %v183 = vld [vmem:[#allocation2] sm:$0xf]
        %vm184 = vcmask 31744
        %v186 = vsel %vm184, %v183, 0
        %v189 = vsel %vm177, %v182, 0
        %191 = vmatprep.subr.mxu0 0.0
        %192 = vmatpush1.msra.mxu0 0.0
        %193 = vmatprep.subr.mxu0 0.0
        %194 = vmatpush1.msra.mxu0 0.0
        %195 = vmatprep.subr.mxu0 0.0
        %196 = vmatpush1.msra.mxu0 0.0
        %197 = vmatprep.subr.mxu0 0.0
        %198 = vmatpush1.msra.mxu0 0.0
        %199 = vmatprep.subr.mxu0 0.0
        %200 = vmatpush1.msra.mxu0 0.0
        %201 = vmatprep.subr.mxu0 0.0
        %202 = vmatpush1.msra.mxu0 0.0
        %203 = vmatprep.subr.mxu0 0.0
        %204 = vmatpush1.msra.mxu0 0.0
        %205 = vmatprep.subr.mxu0 0.0
        %206 = vmatpush1.msra.mxu0 0.0
        %207 = vmatprep.subr.mxu0 0.0
        %208 = vmatpush1.msra.mxu0 0.0
        %209 = vmatprep.subr.mxu0 0.0
        %210 = vmatpush1.msra.mxu0 0.0
        %211 = vmatprep.subr.mxu0 0.0
        %212 = vmatpush1.msra.mxu0 0.0
        %213 = vmatprep.subr.mxu0 0.0
        %214 = vmatpush1.msra.mxu0 0.0
        %215 = vmatprep.subr.mxu0 0.0
        %216 = vmatpush1.msra.mxu0 0.0
        %217 = vmatprep.subr.mxu0 0.0
        %218 = vmatpush1.msra.mxu0 0.0
        %219 = vmatprep.subr.mxu0 0.0
        %220 = vmatpush1.msra.mxu0 0.0
        %221 = vmatprep.subr.mxu0 0.0
        %222 = vmatpush1.msra.mxu0 %v189
        %223 = vmatprep.subr.mxu0 0.0
        %224 = vmatpush2.msra.mxu0 0.0
        %225 = vmatprep.subr.mxu0 0.0
        %226 = vmatpush2.msra.mxu0 0.0
        %227 = vmatprep.subr.mxu0 0.0
        %228 = vmatpush2.msra.mxu0 0.0
        %229 = vmatprep.subr.mxu0 0.0
        %230 = vmatpush2.msra.mxu0 0.0
        %231 = vmatprep.subr.mxu0 0.0
        %232 = vmatpush2.msra.mxu0 0.0
        %233 = vmatprep.subr.mxu0 0.0
        %234 = vmatpush2.msra.mxu0 0.0
        %235 = vmatprep.subr.mxu0 0.0
        %236 = vmatpush2.msra.mxu0 0.0
        %237 = vmatprep.subr.mxu0 0.0
        %238 = vmatpush2.msra.mxu0 0.0
        %239 = vmatprep.subr.mxu0 0.0
        %240 = vmatpush2.msra.mxu0 0.0
        %241 = vmatprep.subr.mxu0 0.0
        %242 = vmatpush2.msra.mxu0 0.0
        %243 = vmatprep.subr.mxu0 0.0
        %244 = vmatpush2.msra.mxu0 0.0
        %245 = vmatprep.subr.mxu0 0.0
        %246 = vmatpush2.msra.mxu0 0.0
        %247 = vmatprep.subr.mxu0 0.0
        %248 = vmatpush2.msra.mxu0 0.0
        %249 = vmatprep.subr.mxu0 0.0
        %250 = vmatpush2.msra.mxu0 0.0
        %251 = vmatprep.subr.mxu0 0.0
        %252 = vmatpush2.msra.mxu0 0.0
        %253 = vmatprep.subr.mxu0 0.0
        %254 = vmatpush2.msra.mxu0 0.0
        %255 = vmatprep.mubr.f32.mxu0 0.0
        %256 = vmatmul.mubr.f32.gmra.mxu0 %v186
        %v257 = vpop.f32.mrf.mxu0
        %v258 = vadd.f32 0.0, %v257
        %v259 = vpop.f32.mrf.mxu0
        %260 = vdwg.mxu0
        %v261 = vxor.u32 %v258, 2147483648
        %v262 = vmul.f32 %v261, 1.442695
        %v263 = vpow.pop %v262
        %v264 = vadd.f32 %v263, 1.0
        %v265 = vrcp.pop %v264
        %v266 = vmul.f32 1.0, %v265
        %268 = vset.pattern.permute.xlu0 0
        %269 = vperm.xlu0 %268, %v266
        %v270 = vpop.permute.xlu0 %269
        %v272 = vunpack.c.l.s4 839922192
        %v273 = vunpack.c.0.s8 %v272
        %v274 = vlaneseq
        %v275 = vshrl.u32 %v274, 7
        %v276 = vsub.s32 %v273, %v275
        %v277 = vrot.slane %v270, %v276
        %v279 = vmul.f32 %v173, %v277
        %280 = vst [vmem:[%s172] sm:$0xff] %v279
        %s281 = sand.u32 %s75, 1
        %s282 = scalar_lea.sflag [#allocation4], %s281
        %s283 = sand.u32 %s75, 1
        %s284 = smul.addr %s283, 8
        %s285 = scalar_lea.vmem [#allocation7], %s284
        // Predicated region
        $region37: #{tpu_custom_call.1} parent=27 // pred_check
          %p286 = pneg %p85
        $region38: #{tpu_custom_call.1} parent=27 // pred_check_branch
          %288 = sbr.rel (%p286) target = $region40
        $region39: #{tpu_custom_call.1} parent=27 // pred_region
          %s290 = ssub.s32 128, 128
          %291 = vsyncadd %s282, %s290
          %s292 = smul.addr %s20, 2
          %s293 = smul.addr %s292, 64
          %s294 = scalar_lea.hbm %s2, %s293
          %s296 = sshll.u32 %s285, 4
          %s297 = int_to_ptr.vmem [resolvable:$true] %s296
          %299 = dma.vmem_to_hbm [thread:$0]  %s297, 128, %s294, %s282
        $region40: #{tpu_custom_call.1} parent=27 // pred_fallthru
          _
      $region28: #{tpu_custom_call.1} parent=5 // pred_fallthru
        _
      %p300 = scmp.le.s32.totalorder 2, %s15
      // Predicated region
      $region41: #{tpu_custom_call.1} parent=5 // pred_check
        %p301 = pneg %p300
      $region42: #{tpu_custom_call.1} parent=5 // pred_check_branch
        %303 = sbr.rel (%p301) target = $region44
      $region43: #{tpu_custom_call.1} parent=5 // pred_region
        %s304 = ssub.s32 %s15, 2
        // Predicated region
        $region45: #{tpu_custom_call.1} parent=43 // pred_check
          %p305 = pneg %p91
        $region46: #{tpu_custom_call.1} parent=43 // pred_check_branch
          %307 = sbr.rel (%p305) target = $region48
        $region47: #{tpu_custom_call.1} parent=43 // pred_region
          %s308 = sand.u32 %s76, 1
          %s309 = scalar_lea.sflag [#allocation4], %s308
          %s310 = sand.u32 %s76, 1
          %s311 = smul.addr %s310, 8
          %s312 = scalar_lea.vmem [#allocation7], %s311
          %313 = dma.done %s309, 128
        $region48: #{tpu_custom_call.1} parent=43 // pred_fallthru
          _
      $region44: #{tpu_custom_call.1} parent=5 // pred_fallthru
        _
    $region6: #{tpu_custom_call.1} parent=1 // loop_footer
      %s19 = sadd.s32 1, %s15
    $region7: #{tpu_custom_call.1} parent=1 // loop_footer_branch
      %14 = sbr.rel target = $region3
    $region8: #{tpu_custom_call.1} parent=1 // loop_exit
      _
    %314 = vsyncpa [#allocation3], 1
    %s315 = scalar_lea.sflag [#allocation3], 1
    %316 = vsyncpa %s315, 1
    %317 = vsyncpa [#allocation6], 1
    %s318 = scalar_lea.sflag [#allocation6], 1
    %319 = vsyncpa %s318, 1
    %320 = vsyncpa [#allocation4], 1
    %s321 = scalar_lea.sflag [#allocation4], 1
    %322 = vsyncpa %s321, 1

</llo_original>
